<compile_context>
chip_gen: v7x
topology: tpu7x:2x2x1
jax: 0.10.0
libtpu: 0.0.40
codegen_flags: <defaults>
</compile_context>

<pallas_src>
import functools

import jax
import jax.numpy as jnp
from jax.experimental import pallas as pl
from jax.experimental.pallas import tpu as pltpu


def _round_up(x, m):
    return ((x + m - 1) // m) * m


def _cdiv(a, b):
    return -(-a // b)


def _pick_align(dim):
    # Prefer 256-wide tiles (v6e/v7x MXU is 2x256x256) when that does not add
    # any padding beyond the 128-alignment floor (v5e MXU is 4x128x128).
    return 256 if _round_up(dim, 128) % 256 == 0 else 128


def _vmem_ceiling_bytes():
    try:
        cap = getattr(pltpu.get_tpu_info(), "vmem_capacity_bytes", None)
    except Exception:
        cap = None
    if not cap:
        cap = 64 * 1024 * 1024  # conservative default (v7x per-TC VMEM)
    # Leave ~25% headroom for compiler-internal scratch / semaphores.
    return int(cap) * 3 // 4


def _make_linear_act_kernel(activation):
    """Kernel body closed over a traceable elementwise activation fn."""

    def kernel(x_ref, w_ref, b_ref, o_ref, acc_ref):
        k = pl.program_id(2)

        @pl.when(k == 0)
        def _():
            acc_ref[...] = jnp.zeros_like(acc_ref)

        # x tile: (tm, tk); w tile (pre-transposed in wrapper): (tk, tn).
        # Plain jnp.dot -> MXU, no in-kernel RHS transpose.
        acc_ref[...] += jnp.dot(
            x_ref[...], w_ref[...], preferred_element_type=jnp.float32
        )

        @pl.when(k == pl.num_programs(2) - 1)
        def _():
            y = acc_ref[...] + b_ref[...]  # bias already f32, shape (1, tn)
            o_ref[...] = activation(y).astype(o_ref.dtype)

    return kernel


def linear_and_activation(x, weight, bias, activation=jax.nn.relu, *,
                          tm=None, tn=None, tk=None,
                          cast_to_bf16=False, input_buffers=2):
    """
    x      : (B, in_features)
    weight : (out_features, in_features)   -- PyTorch nn.Linear convention
    bias   : (out_features,)
    Returns activation(x @ weight.T + bias), shape (B, out_features), dtype of x.
    The activation must be elementwise.
    """
    B, in_f = x.shape
    out_f, in_f2 = weight.shape
    assert in_f == in_f2, "weight/in_features mismatch"
    assert bias.shape == (out_f,)

    out_dtype = x.dtype

    # Optional reduced-precision compute path (accumulation stays f32).
    if cast_to_bf16:
        x = x.astype(jnp.bfloat16)
        weight = weight.astype(jnp.bfloat16)
    compute_dtype = x.dtype

    # Sublane packing minimum depends on dtype (8 for f32, 16 for bf16, ...).
    sub = max(8, 32 // jnp.dtype(compute_dtype).itemsize)
    align_n = _pick_align(out_f)
    align_k = _pick_align(in_f)

    # ---- tile selection -----------------------------------------------------
    # Balanced M tile: avoids a mostly-padded trailing M tile.
    if tm is None:
        tm_max = 512
        n_m_tiles = max(1, _cdiv(B, tm_max))
        tm = min(_round_up(_cdiv(B, n_m_tiles), sub), _round_up(B, sub))
    if tn is None:
        tn = min(1024, _round_up(out_f, align_n))
    if tk is None:
        tk = min(512, _round_up(in_f, align_k))
    tm = _round_up(tm, sub)
    tn = _round_up(tn, align_n)
    tk = _round_up(tk, align_k)

    # Padded problem sizes (zeros along K do not change the matmul; padded
    # M rows / N cols are sliced off at the end).
    Bp = _round_up(B, tm)
    Np = _round_up(out_f, tn)
    Kp = _round_up(in_f, tk)

    # Guarantee >= 2 tiles on the parallel axes when possible, so both v7x
    # TensorCores get work (harmless on single-TC v5e/v6e).
    if (Bp // tm) * (Np // tn) < 2:
        tn_half = _round_up(_cdiv(Np, 2), align_n)
        if tn_half < tn and _round_up(out_f, tn_half) // tn_half >= 2:
            tn = tn_half
            Np = _round_up(out_f, tn)

    # ---- operand prep (all one-time HBM work, amortized over the grid) ------
    xp = x if (Bp == B and Kp == in_f) else jnp.pad(
        x, ((0, Bp - B), (0, Kp - in_f)))

    # Pre-transpose weight to (K, N) so the kernel RHS is MXU-native.
    wt = weight.T  # (in_f, out_f)
    wp = wt if (Kp == in_f and Np == out_f) else jnp.pad(
        wt, ((0, Kp - in_f), (0, Np - out_f)))

    bp = bias.astype(jnp.float32)
    if Np != out_f:
        bp = jnp.pad(bp, (0, Np - out_f))
    bp = bp.reshape(1, Np)

    grid = (Bp // tm, Np // tn, Kp // tk)
    kernel = _make_linear_act_kernel(activation)

    # Optional deeper buffering of the two streaming inputs (useful on v5e if
    # profiling shows exposed DMA); default 2 == standard double buffering.
    if input_buffers > 2:
        x_spec = pl.BlockSpec((tm, tk), lambda i, j, k: (i, k),
                              pipeline_mode=pl.Buffered(input_buffers))
        w_spec = pl.BlockSpec((tk, tn), lambda i, j, k: (k, j),
                              pipeline_mode=pl.Buffered(input_buffers))
    else:
        x_spec = pl.BlockSpec((tm, tk), lambda i, j, k: (i, k))
        w_spec = pl.BlockSpec((tk, tn), lambda i, j, k: (k, j))

    grid_spec = pltpu.PrefetchScalarGridSpec(
        num_scalar_prefetch=0,
        grid=grid,
        in_specs=[
            x_spec,                                         # x tile (tm, tk)
            w_spec,                                         # W^T tile (tk, tn)
            pl.BlockSpec((1, tn), lambda i, j, k: (0, j)),  # bias tile (f32)
        ],
        out_specs=pl.BlockSpec((tm, tn), lambda i, j, k: (i, j)),
        scratch_shapes=[pltpu.VMEM((tm, tn), jnp.float32)],
    )

    # VMEM budget: buffered x / W / out / bias tiles + f32 accumulator.
    nbuf = max(2, input_buffers)
    c_bytes = jnp.dtype(compute_dtype).itemsize
    o_bytes = jnp.dtype(out_dtype).itemsize
    est = (nbuf * tm * tk * c_bytes
           + nbuf * tk * tn * c_bytes
           + 2 * tm * tn * o_bytes
           + 2 * tn * 4
           + tm * tn * 4)
    vmem_ceiling = _vmem_ceiling_bytes()
    vmem_limit = int(min(max(2 * est, 32 * 1024 * 1024), vmem_ceiling))

    cost = pl.CostEstimate(
        flops=2 * B * in_f * out_f,
        transcendentals=0,
        bytes_accessed=(xp.size * c_bytes
                        + wp.size * c_bytes
                        + bp.size * 4
                        + Bp * Np * o_bytes),
    )

    out_p = pl.pallas_call(
        kernel,
        out_shape=jax.ShapeDtypeStruct((Bp, Np), out_dtype),
        grid_spec=grid_spec,
        compiler_params=pltpu.CompilerParams(
            dimension_semantics=("parallel", "parallel", "arbitrary"),
            vmem_limit_bytes=vmem_limit,
        ),
        cost_estimate=cost,
    )(xp, wp, bp)

    if Bp != B or Np != out_f:
        out_p = out_p[:B, :out_f]
    return out_p


if __name__ == "__main__":
    # Small shapes consistent with nn.Linear(in_features, out_features).
    B, in_features, out_features = 8, 32, 128
    activation = jax.nn.relu  # corresponds to passing nn.ReLU() / torch.relu

    key = jax.random.PRNGKey(0)
    kx, kw, kb = jax.random.split(key, 3)

    # Init mimicking PyTorch nn.Linear default: U(-1/sqrt(in_f), 1/sqrt(in_f)).
    bound = 1.0 / (in_features ** 0.5)
    x = jax.random.normal(kx, (B, in_features), dtype=jnp.float32)
    weight = jax.random.uniform(
        kw, (out_features, in_features), minval=-bound, maxval=bound,
        dtype=jnp.float32)
    bias = jax.random.uniform(
        kb, (out_features,), minval=-bound, maxval=bound, dtype=jnp.float32)

    fn = jax.jit(functools.partial(linear_and_activation,
                                   activation=activation))
    out = jax.block_until_ready(fn(x, weight, bias))

    # Reference check in plain JAX (MXU f32 matmul may differ in low bits).
    ref = activation(x @ weight.T + bias)
    assert out.shape == (B, out_features)
    assert out.dtype == x.dtype
    assert jnp.allclose(out, ref, atol=2e-5, rtol=2e-5)

    print("KERNEL_OK")
</pallas_src>

<mosaic_0001>
module attributes {stable_mosaic.version = 11 : i64} {
  func.func @kernel(%arg0: i32, %arg1: i32, %arg2: i32, %arg3: memref<8x128xf32, #tpu.memory_space<vmem>>, %arg4: memref<128x128xf32, #tpu.memory_space<vmem>>, %arg5: memref<1x128xf32, #tpu.memory_space<vmem>>, %arg6: memref<8x128xf32, #tpu.memory_space<vmem>>, %arg7: memref<8x128xf32, #tpu.memory_space<vmem>>) attributes {dimension_semantics = [#tpu.dimension_semantics<parallel>, #tpu.dimension_semantics<parallel>, #tpu.dimension_semantics<arbitrary>], iteration_bounds = array<i64: 1, 1, 1>, scalar_prefetch = 0 : i64, scratch_operands = 1 : i64, tpu.core_type = #tpu.core_type<tc>, window_params = [{transform_indices = @transform_0, window_bounds = array<i64: 8, 128>}, {transform_indices = @transform_1, window_bounds = array<i64: 128, 128>}, {transform_indices = @transform_2, window_bounds = array<i64: 1, 128>}, {transform_indices = @transform_3, window_bounds = array<i64: 8, 128>}]} {
    %c0_i32 = arith.constant 0 : i32
    %0 = arith.cmpi eq, %arg2, %c0_i32 : i32
    %1 = arith.extui %0 : i1 to i32
    %c0_i32_0 = arith.constant 0 : i32
    %2 = arith.cmpi ne, %1, %c0_i32_0 : i32
    scf.if %2 {
      %cst_10 = arith.constant 0.000000e+00 : f32
      %12 = vector.broadcast %cst_10 : f32 to vector<8x128xf32>
      %c0_11 = arith.constant 0 : index
      %c0_12 = arith.constant 0 : index
      %13 = vector.load %arg7[%c0_11, %c0_12] : memref<8x128xf32, #tpu.memory_space<vmem>>, vector<8x128xf32>
      tpu.vector_store %arg7[%c0_11, %c0_12], %12 {strides = array<i32>} : memref<8x128xf32, #tpu.memory_space<vmem>>, vector<8x128xf32>,
    } else {
    }
    %c0 = arith.constant 0 : index
    %c0_1 = arith.constant 0 : index
    %3 = vector.load %arg7[%c0, %c0_1] : memref<8x128xf32, #tpu.memory_space<vmem>>, vector<8x128xf32>
    %c0_2 = arith.constant 0 : index
    %c0_3 = arith.constant 0 : index
    %4 = vector.load %arg3[%c0_2, %c0_3] : memref<8x128xf32, #tpu.memory_space<vmem>>, vector<8x128xf32>
    %c0_4 = arith.constant 0 : index
    %c0_5 = arith.constant 0 : index
    %5 = vector.load %arg4[%c0_4, %c0_5] : memref<128x128xf32, #tpu.memory_space<vmem>>, vector<128x128xf32>
    %cst = arith.constant dense<0.000000e+00> : vector<8x128xf32>
    %6 = tpu.matmul %4, %5, %cst {dimension_numbers = #tpu.dot_dimension_numbers<[1], [0], [0], [1], [0, 0, 1, 1], [], []>} : vector<8x128xf32>, vector<128x128xf32>, vector<8x128xf32> -> vector<8x128xf32>
    %7 = arith.addf %3, %6 : vector<8x128xf32>
    %c0_6 = arith.constant 0 : index
    %c0_7 = arith.constant 0 : index
    %8 = vector.load %arg7[%c0_6, %c0_7] : memref<8x128xf32, #tpu.memory_space<vmem>>, vector<8x128xf32>
    tpu.vector_store %arg7[%c0_6, %c0_7], %7 {strides = array<i32>} : memref<8x128xf32, #tpu.memory_space<vmem>>, vector<8x128xf32>,
    %c0_i32_8 = arith.constant 0 : i32
    %9 = arith.cmpi eq, %arg2, %c0_i32_8 : i32
    %10 = arith.extui %9 : i1 to i32
    %c0_i32_9 = arith.constant 0 : i32
    %11 = arith.cmpi ne, %10, %c0_i32_9 : i32
    scf.if %11 {
      %c0_10 = arith.constant 0 : index
      %c0_11 = arith.constant 0 : index
      %12 = vector.load %arg7[%c0_10, %c0_11] : memref<8x128xf32, #tpu.memory_space<vmem>>, vector<8x128xf32>
      %c0_12 = arith.constant 0 : index
      %c0_13 = arith.constant 0 : index
      %13 = vector.load %arg5[%c0_12, %c0_13] : memref<1x128xf32, #tpu.memory_space<vmem>>, vector<1x128xf32>
      %14 = vector.broadcast %13 : vector<1x128xf32> to vector<8x128xf32>
      %15 = arith.addf %12, %14 : vector<8x128xf32>
      %cst_14 = arith.constant 0.000000e+00 : f32
      %16 = vector.broadcast %cst_14 : f32 to vector<8x128xf32>
      %17 = arith.maximumf %15, %16 : vector<8x128xf32>
      %c0_15 = arith.constant 0 : index
      %c0_16 = arith.constant 0 : index
      %18 = vector.load %arg6[%c0_15, %c0_16] : memref<8x128xf32, #tpu.memory_space<vmem>>, vector<8x128xf32>
      tpu.vector_store %arg6[%c0_15, %c0_16], %17 {strides = array<i32>} : memref<8x128xf32, #tpu.memory_space<vmem>>, vector<8x128xf32>,
    } else {
    }
    return
  }
  func.func @transform_0(%arg0: i32, %arg1: i32, %arg2: i32) -> (i32, i32) {
    %c0_i32 = arith.constant 0 : i32
    return %arg0, %arg2 : i32, i32
  }
  func.func @transform_1(%arg0: i32, %arg1: i32, %arg2: i32) -> (i32, i32) {
    %c0_i32 = arith.constant 0 : i32
    return %arg2, %arg1 : i32, i32
  }
  func.func @transform_2(%arg0: i32, %arg1: i32, %arg2: i32) -> (i32, i32) {
    %c0_i32 = arith.constant 0 : i32
    %c0_i32_0 = arith.constant 0 : i32
    return %c0_i32, %arg1 : i32, i32
  }
  func.func @transform_3(%arg0: i32, %arg1: i32, %arg2: i32) -> (i32, i32) {
    %c0_i32 = arith.constant 0 : i32
    return %arg0, %arg1 : i32, i32
  }
}

</mosaic_0001>

<llo_original>
// kernel: linear_and_activation.1
$region0: #{linear_and_activation.1}
  #allocation0 [shape = 'u32[]', space=smem, size = 0x4, offset = 0x4, fixed_abs, tag = 'smem constant byte address 0x4 - core index']
  #allocation1 [shape = 'u32[144,128]{1,0:T(1,128)}', space=vmem, size = 0x12000, scoped, tag = 'internal scratch']
  #allocation2 [shape = 'f32[8,128]{1,0:T(8,128)}', space=vmem, size = 0x1000, scoped, tag = 'scratch operand']
  %s0 = inlined_call_operand.vmem [shape: f32[8,128], index: 0, kind: input, shape index: {}]
  %s1 = inlined_call_operand.vmem [shape: f32[128,128], index: 1, kind: input, shape index: {}]
  %s2 = inlined_call_operand.vmem [shape: f32[1,128], index: 2, kind: input, shape index: {}]
  %s3 = inlined_call_operand.hbm [shape: f32[8,128], index: 3, kind: output, shape index: {}]
  %s4 = sld [smem:[#allocation0]]
  $region30: #{linear_and_activation.1} parent=0
    _
  %s6 = ssub.s32 1, %s4
  %s7 = scalar_select 0, %s6, %s4
  $region1: #{linear_and_activation.1} parent=0
    #allocation3 [shape = 'u8[4096]{0}', space=vmem, size = 0x1000, scoped, tag = 'output window, operand 0, single buffered']
    #allocation4 [shape = 's32[1]{0}', space=sflag, size = 0x4, scoped, tag = 'scoped memory for linear_and_activation.1']
    %8 = vsyncpa [#allocation4], 0
    // Predicated region
    $region2: #{linear_and_activation.1} parent=1 // pred_check
      _
    $region3: #{linear_and_activation.1} parent=1 // pred_check_branch
      %10 = sbr.rel (0) target = $region5
    $region4: #{linear_and_activation.1} parent=1 // pred_region
      _
    $region5: #{linear_and_activation.1} parent=1 // pred_fallthru
      _
    // Predicated region
    $region6: #{linear_and_activation.1} parent=1 // pred_check
      _
    $region7: #{linear_and_activation.1} parent=1 // pred_check_branch
      %12 = sbr.rel (0) target = $region9
    $region8: #{linear_and_activation.1} parent=1 // pred_region
      _
    $region9: #{linear_and_activation.1} parent=1 // pred_fallthru
      _
    // Predicated region
    $region10: #{linear_and_activation.1} parent=1 // pred_check
      _
    $region11: #{linear_and_activation.1} parent=1 // pred_check_branch
      %14 = sbr.rel (0) target = $region13
    $region12: #{linear_and_activation.1} parent=1 // pred_region
      _
    $region13: #{linear_and_activation.1} parent=1 // pred_fallthru
      _
    %p15 = scmp.eq.s32.totalorder 0, 0
    // Predicated region
    $region14: #{linear_and_activation.1} parent=1 // pred_check
      %p16 = pneg %p15
    $region15: #{linear_and_activation.1} parent=1 // pred_check_branch
      %18 = sbr.rel (%p16) target = $region17
    $region16: #{linear_and_activation.1} parent=1 // pred_region
      %19 = vst [vmem:[#allocation2] sm:$0xff] 0.0
    $region17: #{linear_and_activation.1} parent=1 // pred_fallthru
      _
    %v20 = vld [vmem:[#allocation2] sm:$0xff]
    %v21 = vld [vmem:[%s0] sm:$0xff]
    %v22 = vld [vmem:[%s1] sm:$0xff]
    %v23 = vld [vmem:[%s1 + $0x8] sm:$0xff]
    %v24 = vld [vmem:[%s1 + $0x10] sm:$0xff]
    %v25 = vld [vmem:[%s1 + $0x18] sm:$0xff]
    %v26 = vld [vmem:[%s1 + $0x20] sm:$0xff]
    %v27 = vld [vmem:[%s1 + $0x28] sm:$0xff]
    %v28 = vld [vmem:[%s1 + $0x30] sm:$0xff]
    %v29 = vld [vmem:[%s1 + $0x38] sm:$0xff]
    %v30 = vld [vmem:[%s1 + $0x40] sm:$0xff]
    %v31 = vld [vmem:[%s1 + $0x48] sm:$0xff]
    %v32 = vld [vmem:[%s1 + $0x50] sm:$0xff]
    %v33 = vld [vmem:[%s1 + $0x58] sm:$0xff]
    %v34 = vld [vmem:[%s1 + $0x60] sm:$0xff]
    %v35 = vld [vmem:[%s1 + $0x68] sm:$0xff]
    %v36 = vld [vmem:[%s1 + $0x70] sm:$0xff]
    %v37 = vld [vmem:[%s1 + $0x78] sm:$0xff]
    %38 = vmatprep.subr.mxu0 0.0
    %39 = vmatpush1.msra.mxu0 %v22
    %40 = vmatprep.subr.mxu0 0.0
    %41 = vmatpush1.msra.mxu0 %v23
    %42 = vmatprep.subr.mxu0 0.0
    %43 = vmatpush1.msra.mxu0 %v24
    %44 = vmatprep.subr.mxu0 0.0
    %45 = vmatpush1.msra.mxu0 %v25
    %46 = vmatprep.subr.mxu0 0.0
    %47 = vmatpush1.msra.mxu0 %v26
    %48 = vmatprep.subr.mxu0 0.0
    %49 = vmatpush1.msra.mxu0 %v27
    %50 = vmatprep.subr.mxu0 0.0
    %51 = vmatpush1.msra.mxu0 %v28
    %52 = vmatprep.subr.mxu0 0.0
    %53 = vmatpush1.msra.mxu0 %v29
    %54 = vmatprep.subr.mxu0 0.0
    %55 = vmatpush1.msra.mxu0 %v30
    %56 = vmatprep.subr.mxu0 0.0
    %57 = vmatpush1.msra.mxu0 %v31
    %58 = vmatprep.subr.mxu0 0.0
    %59 = vmatpush1.msra.mxu0 %v32
    %60 = vmatprep.subr.mxu0 0.0
    %61 = vmatpush1.msra.mxu0 %v33
    %62 = vmatprep.subr.mxu0 0.0
    %63 = vmatpush1.msra.mxu0 %v34
    %64 = vmatprep.subr.mxu0 0.0
    %65 = vmatpush1.msra.mxu0 %v35
    %66 = vmatprep.subr.mxu0 0.0
    %67 = vmatpush1.msra.mxu0 %v36
    %68 = vmatprep.subr.mxu0 0.0
    %69 = vmatpush1.msra.mxu0 %v37
    %70 = vmatprep.subr.mxu0 0.0
    %71 = vmatpush1.msra.mxu0 0.0
    %72 = vmatprep.subr.mxu0 0.0
    %73 = vmatpush1.msra.mxu0 0.0
    %74 = vmatprep.subr.mxu0 0.0
    %75 = vmatpush1.msra.mxu0 0.0
    %76 = vmatprep.subr.mxu0 0.0
    %77 = vmatpush1.msra.mxu0 0.0
    %78 = vmatprep.subr.mxu0 0.0
    %79 = vmatpush1.msra.mxu0 0.0
    %80 = vmatprep.subr.mxu0 0.0
    %81 = vmatpush1.msra.mxu0 0.0
    %82 = vmatprep.subr.mxu0 0.0
    %83 = vmatpush1.msra.mxu0 0.0
    %84 = vmatprep.subr.mxu0 0.0
    %85 = vmatpush1.msra.mxu0 0.0
    %86 = vmatprep.subr.mxu0 0.0
    %87 = vmatpush1.msra.mxu0 0.0
    %88 = vmatprep.subr.mxu0 0.0
    %89 = vmatpush1.msra.mxu0 0.0
    %90 = vmatprep.subr.mxu0 0.0
    %91 = vmatpush1.msra.mxu0 0.0
    %92 = vmatprep.subr.mxu0 0.0
    %93 = vmatpush1.msra.mxu0 0.0
    %94 = vmatprep.subr.mxu0 0.0
    %95 = vmatpush1.msra.mxu0 0.0
    %96 = vmatprep.subr.mxu0 0.0
    %97 = vmatpush1.msra.mxu0 0.0
    %98 = vmatprep.subr.mxu0 0.0
    %99 = vmatpush1.msra.mxu0 0.0
    %100 = vmatprep.subr.mxu0 0.0
    %101 = vmatpush1.msra.mxu0 0.0
    %102 = vmatprep.mubr.f32.mxu0 0.0
    %103 = vmatmul.mubr.f32.gmra.mrb[0].mxu0 %v21
    %v104 = vpop.f32.mrb[0].mxu0
    %v105 = vadd.f32 0.0, %v104
    %v106 = vpop.f32.mrb[0].mxu0
    %107 = vdwg.mxu0
    %v108 = vadd.f32 %v20, %v105
    %109 = vst [vmem:[#allocation2] sm:$0xff] %v108
    // Predicated region
    $region18: #{linear_and_activation.1} parent=1 // pred_check
      %p110 = pneg %p15
    $region19: #{linear_and_activation.1} parent=1 // pred_check_branch
      %112 = sbr.rel (%p110) target = $region21
    $region20: #{linear_and_activation.1} parent=1 // pred_region
      %v113 = vld [vmem:[#allocation2] sm:$0xff]
      %v114 = vld [vmem:[%s2] sm:$0x1]
      %v116 = vlaneseq
      %v117 = vshrl.u32 %v116, 7
      %v118 = vsub.s32 0, %v117
      %v119 = vrot.slane %v114, %v118
      %v121 = vadd.f32 %v113, %v119
      %v122 = vmax.f32 %v121, 0.0
      %123 = vst [vmem:[#allocation3] sm:$0xff] %v122
    $region21: #{linear_and_activation.1} parent=1 // pred_fallthru
      _
    // Predicated region
    $region22: #{linear_and_activation.1} parent=1 // pred_check
      _
    $region23: #{linear_and_activation.1} parent=1 // pred_check_branch
      %125 = sbr.rel (0) target = $region25
    $region24: #{linear_and_activation.1} parent=1 // pred_region
      %s127 = ssub.s32 128, 128
      %128 = vsyncadd [#allocation4], %s127
      %s130 = sshll.u32 [#allocation3], 4
      %s131 = int_to_ptr.vmem [resolvable:$true] %s130
      %133 = dma.vmem_to_hbm [thread:$0]  %s131, 128, %s3, [#allocation4]
    $region25: #{linear_and_activation.1} parent=1 // pred_fallthru
      _
    // Predicated region
    $region26: #{linear_and_activation.1} parent=1 // pred_check
      _
    $region27: #{linear_and_activation.1} parent=1 // pred_check_branch
      %135 = sbr.rel (0) target = $region29
    $region28: #{linear_and_activation.1} parent=1 // pred_region
      %136 = dma.done [#allocation4], 128
    $region29: #{linear_and_activation.1} parent=1 // pred_fallthru
      _
    %137 = vsyncpa [#allocation4], 1

</llo_original>
